<compile_context>
chip_gen: v7x
topology: tpu7x:2x2x1
jax: 0.10.0
libtpu: 0.0.40
codegen_flags: <defaults>
</compile_context>

<pallas_src>
import jax
import jax.numpy as jnp
from jax.experimental import pallas as pl
from jax.experimental.pallas import tpu as pltpu


_LANE_CANDIDATES = (4096, 2048, 1024, 512, 256, 128)   # lane widths to try (wide first)
_BLOCK_BYTES = 2 * 1024 * 1024       # ~2 MiB per block: ~85% of HBM roofline, v5e-safe
_SMALL_BYTES = 2 * 1024 * 1024       # <= this -> single whole-array block, grid=()
_SMALL_UNALIGNED_BYTES = 256 * 1024  # whole-block limit when n is not a multiple of 128
_MIN_SUBLANES = {8: 8, 4: 8, 2: 16, 1: 32}  # min sublane tile per itemsize


def _identity_kernel(x_ref, o_ref):
    # Elementwise hot path: straight copy of the current VMEM tile.
    o_ref[...] = x_ref[...]


def _best_lanes(n: int):
    """Largest lane width (multiple of 128) that divides n, or None."""
    for lanes in _LANE_CANDIDATES:
        if n % lanes == 0:
            return lanes
    return None


def _choose_tiling(n: int, itemsize: int, sub: int):
    """Find (rows, lanes, tm) with rows*lanes == n, tm | rows, block <= _BLOCK_BYTES,
    and tm a multiple of the min sublane tile (or the full rows extent)."""
    for lanes in _LANE_CANDIDATES:
        if n % lanes:
            continue
        rows = n // lanes
        budget_rows = _BLOCK_BYTES // (lanes * itemsize)
        if budget_rows >= rows:
            return rows, lanes, rows  # whole array fits in one block
        t = (min(budget_rows, rows) // sub) * sub
        while t >= sub:
            if rows % t == 0:
                return rows, lanes, t
            t -= sub
        # no legal row tile for this lane width; try a narrower lane axis
    return None


def _whole_block_copy(x2d: jax.Array) -> jax.Array:
    """Single whole-array block (grid=()): exactly one DMA in, one DMA out."""
    return pl.pallas_call(
        _identity_kernel,
        out_shape=jax.ShapeDtypeStruct(x2d.shape, x2d.dtype),
        in_specs=[pl.BlockSpec(memory_space=pltpu.MemorySpace.VMEM)],
        out_specs=pl.BlockSpec(memory_space=pltpu.MemorySpace.VMEM),
        input_output_aliases={0: 0},
    )(x2d)


def _tiled_copy(x2d: jax.Array, tm: int, lanes: int) -> jax.Array:
    rows = x2d.shape[0]
    return pl.pallas_call(
        _identity_kernel,
        out_shape=jax.ShapeDtypeStruct(x2d.shape, x2d.dtype),
        grid=(rows // tm,),
        in_specs=[pl.BlockSpec((tm, lanes), lambda i: (i, 0))],
        out_specs=pl.BlockSpec((tm, lanes), lambda i: (i, 0)),
        input_output_aliases={0: 0},
        compiler_params=pltpu.CompilerParams(
            dimension_semantics=("parallel",),
        ),
    )(x2d)


def mean_encoder_forward(x: jax.Array) -> jax.Array:
    """Identity forward pass of MeanEncoder, computed in a Pallas kernel."""
    orig_shape = x.shape
    n = x.size
    if n == 0:
        return x

    itemsize = x.dtype.itemsize
    sub = _MIN_SUBLANES.get(itemsize, 8)
    total_bytes = n * itemsize
    flat = x.reshape(-1)
    lanes = _best_lanes(n)

    # --- Small inputs: one whole-array block, no grid, no padding. ---
    if lanes is not None and total_bytes <= _SMALL_BYTES:
        out2d = _whole_block_copy(flat.reshape(n // lanes, lanes))
        return out2d.reshape(orig_shape)
    if lanes is None and total_bytes <= _SMALL_UNALIGNED_BYTES:
        # (1, n) whole block is layout-wasteful in VMEM but tiny, so it's fine.
        out2d = _whole_block_copy(flat.reshape(1, n))
        return out2d.reshape(orig_shape)

    # --- Large inputs with a padding-free factorization: big lane-dense tiles. ---
    tiling = _choose_tiling(n, itemsize, sub)
    if tiling is not None:
        rows, lanes2, tm = tiling
        out2d = _tiled_copy(flat.reshape(rows, lanes2), tm, lanes2)
        return out2d.reshape(orig_shape)

    # --- Fallback for awkward large sizes: pad the tail, copy, slice back. ---
    # TODO(synk): replace pad/slice with a masked ragged final block to avoid
    # the extra HBM round trips on non-128-divisible element counts.
    pad = (-n) % (sub * 1024)
    padded = jnp.pad(flat, (0, pad))
    rows, lanes2, tm = _choose_tiling(n + pad, itemsize, sub)
    out2d = _tiled_copy(padded.reshape(rows, lanes2), tm, lanes2)
    return out2d.reshape(-1)[:n].reshape(orig_shape)


class MeanEncoderPallas:
    """Identity function (MeanEncoder). No parameters to initialize."""

    def __init__(self, shape):
        self.shape = shape

    def __call__(self, x):
        return mean_encoder_forward(x)


if __name__ == "__main__":
    key = jax.random.PRNGKey(0)

    # Small NCHW input consistent with the module's typical use.
    x = jax.random.normal(key, (2, 4, 16, 16), dtype=jnp.float32)
    enc = MeanEncoderPallas(shape=(4, 16, 16))
    y = jax.block_until_ready(enc(x))
    assert y.shape == x.shape and y.dtype == x.dtype
    assert bool(jnp.all(y == x))

    # Also exercise the tiled (large-input) path once: 4 MiB f32, grid of 2 MiB blocks.
    x_big = jax.random.normal(key, (8, 8, 128, 128), dtype=jnp.float32)
    y_big = jax.block_until_ready(enc(x_big))
    assert y_big.shape == x_big.shape and y_big.dtype == x_big.dtype
    assert bool(jnp.all(y_big == x_big))

    print("KERNEL_OK")
</pallas_src>

<mosaic_0001>
module attributes {stable_mosaic.version = 11 : i64} {
  func.func @_identity_kernel(%arg0: memref<1x2048xf32, #tpu.memory_space<vmem>>, %arg1: memref<1x2048xf32, #tpu.memory_space<vmem>>) attributes {dimension_semantics = [], scalar_prefetch = 0 : i64, scratch_operands = 0 : i64, tpu.core_type = #tpu.core_type<tc>} {
    %c0 = arith.constant 0 : index
    %c0_0 = arith.constant 0 : index
    %0 = vector.load %arg0[%c0, %c0_0] : memref<1x2048xf32, #tpu.memory_space<vmem>>, vector<1x2048xf32>
    %c0_1 = arith.constant 0 : index
    %c0_2 = arith.constant 0 : index
    %1 = vector.load %arg1[%c0_1, %c0_2] : memref<1x2048xf32, #tpu.memory_space<vmem>>, vector<1x2048xf32>
    tpu.vector_store %arg1[%c0_1, %c0_2], %0 {strides = array<i32>} : memref<1x2048xf32, #tpu.memory_space<vmem>>, vector<1x2048xf32>,
    return
  }
}

</mosaic_0001>

<llo_original>
// kernel: tpu_custom_call.1
$region0: #{tpu_custom_call.1}
  #allocation0 [shape = 'u32[]', space=smem, size = 0x4, offset = 0x4, fixed_abs, tag = 'smem constant byte address 0x4 - core index']
  #allocation1 [shape = 'u32[144,128]{1,0:T(1,128)}', space=vmem, size = 0x12000, scoped, tag = 'internal scratch']
  %s0 = inlined_call_operand.hbm [shape: f32[1,2048], index: 0, kind: input, shape index: {}, may-alias: {0,1}]
  %s1 = inlined_call_operand.hbm [shape: f32[1,2048], index: 1, kind: output, shape index: {}, may-alias: {0,1}]
  %s2 = sld [smem:[#allocation0]]
  $region18: #{tpu_custom_call.1} parent=0
    _
  %s4 = ssub.s32 1, %s2
  %s5 = scalar_select 0, %s4, %s2
  $region1: #{tpu_custom_call.1} parent=0
    #allocation2 [shape = 'u8[8192]{0}', space=vmem, size = 0x2000, scoped, tag = 'input window, operand 0, single buffered']
    #allocation3 [shape = 's32[1]{0}', space=sflag, size = 0x4, scoped, tag = 'scoped memory for tpu_custom_call.1']
    #allocation4 [shape = 's32[1]{0}', space=sflag, size = 0x4, scoped, tag = 'scoped memory for tpu_custom_call.1']
    #allocation5 [shape = 'u8[8192]{0}', space=vmem, size = 0x2000, scoped, tag = 'output window, operand 0, single buffered']
    %6 = vsyncpa [#allocation3], 0
    %7 = vsyncpa [#allocation4], 0
    // Predicated region
    $region2: #{tpu_custom_call.1} parent=1 // pred_check
      _
    $region3: #{tpu_custom_call.1} parent=1 // pred_check_branch
      %9 = sbr.rel (0) target = $region5
    $region4: #{tpu_custom_call.1} parent=1 // pred_region
      %s11 = ssub.s32 256, 256
      %12 = vsyncadd [#allocation3], %s11
      %s14 = sshll.u32 [#allocation2], 4
      %s15 = int_to_ptr.vmem [resolvable:$true] %s14
      %17 = dma.hbm_to_vmem [thread:$0]  %s0, 256, %s15, [#allocation3]
    $region5: #{tpu_custom_call.1} parent=1 // pred_fallthru
      _
    // Predicated region
    $region6: #{tpu_custom_call.1} parent=1 // pred_check
      _
    $region7: #{tpu_custom_call.1} parent=1 // pred_check_branch
      %19 = sbr.rel (0) target = $region9
    $region8: #{tpu_custom_call.1} parent=1 // pred_region
      %20 = dma.done [#allocation3], 256
    $region9: #{tpu_custom_call.1} parent=1 // pred_fallthru
      _
    %v21 = vld [vmem:[#allocation2] sm:$0xff]
    %v22 = vld [vmem:[#allocation2 + $0x8] sm:$0xff]
    %23 = vst [vmem:[#allocation5] sm:$0xff] %v21
    %24 = vst [vmem:[#allocation5 + $0x8] sm:$0xff] %v22
    // Predicated region
    $region10: #{tpu_custom_call.1} parent=1 // pred_check
      _
    $region11: #{tpu_custom_call.1} parent=1 // pred_check_branch
      %26 = sbr.rel (0) target = $region13
    $region12: #{tpu_custom_call.1} parent=1 // pred_region
      %s28 = ssub.s32 256, 256
      %29 = vsyncadd [#allocation4], %s28
      %s31 = sshll.u32 [#allocation5], 4
      %s32 = int_to_ptr.vmem [resolvable:$true] %s31
      %34 = dma.vmem_to_hbm [thread:$0]  %s32, 256, %s1, [#allocation4]
    $region13: #{tpu_custom_call.1} parent=1 // pred_fallthru
      _
    // Predicated region
    $region14: #{tpu_custom_call.1} parent=1 // pred_check
      _
    $region15: #{tpu_custom_call.1} parent=1 // pred_check_branch
      %36 = sbr.rel (0) target = $region17
    $region16: #{tpu_custom_call.1} parent=1 // pred_region
      %37 = dma.done [#allocation4], 256
    $region17: #{tpu_custom_call.1} parent=1 // pred_fallthru
      _
    %38 = vsyncpa [#allocation3], 1
    %39 = vsyncpa [#allocation4], 1

</llo_original>
